<compile_context>
chip_gen: v7x
topology: tpu7x:2x2x1
jax: 0.10.0
libtpu: 0.0.40
codegen_flags: <defaults>
</compile_context>

<pallas_src>
import functools
import math

import jax
import jax.numpy as jnp
from jax import lax
from jax.experimental import pallas as pl
from jax.experimental.pallas import tpu as pltpu


_LANES = 128
_N_STATS = 8                 # stats rows, padded to a full (8, 128) tile
_CHUNK = 32                  # rows per dynamic load: aligned for f32/bf16/int8
_DEFAULT_TILE_ROWS = 2048    # 2048x128 px/step


# ----------------------------- Pallas kernel --------------------------------
# Per-(sample, spatial-tile) partial sums accumulated into out_ref[0, k, :]
# (lane-parallel accumulators; the final 128->1 reduce is done in the wrapper):
#   0: sum logsumexp(x0, x1)    1: sum x0    2: sum x1    3: sum t
#   4: sum x0*t                 5: sum x1*t
#   6: sum (1-sigmoid(x0))**g + (1-sigmoid(x1))**g   (gamma != 0 only)
#   7: unused (zero)
def _hybrid_stats_kernel(x_ref, t_ref, out_ref, *, gamma, tr, rows_valid,
                         inner, split, needs_mask):
    j = pl.program_id(1)

    @pl.when(j == 0)
    def _init():
        out_ref[...] = jnp.zeros_like(out_ref)

    n_stats = 7 if gamma != 0.0 else 6

    if needs_mask:
        i = pl.program_id(0)
        tile_row0 = (((i % split) * inner + j) if split > 1 else j) * tr
        valid_rows = rows_valid - tile_row0      # rows of real data in tile
        chunk_iota = lax.broadcasted_iota(jnp.int32, (_CHUNK, _LANES), 0)

    def load(r0, nrows):
        # Native-dtype loads; widen to f32 on the VPU (no wrapper cast pass).
        x0 = x_ref[0, 0, pl.ds(r0, nrows), :].astype(jnp.float32)
        x1 = x_ref[0, 1, pl.ds(r0, nrows), :].astype(jnp.float32)
        t = t_ref[0, pl.ds(r0, nrows), :].astype(jnp.float32)
        return x0, x1, t

    def pixel_stats(x0, x1, t):
        # 2-class logsumexp: max(x0,x1) + log1p(exp(-|x0-x1|))  (2 EUP ops/px)
        lse = jnp.maximum(x0, x1) + jnp.log1p(jnp.exp(-jnp.abs(x0 - x1)))
        outs = [lse, x0, x1, t, x0 * t, x1 * t]
        if gamma != 0.0:
            # (1 - sigmoid(x))**gamma == exp(-gamma * softplus(x)), stable.
            sp0 = jnp.maximum(x0, 0.0) + jnp.log1p(jnp.exp(-jnp.abs(x0)))
            sp1 = jnp.maximum(x1, 0.0) + jnp.log1p(jnp.exp(-jnp.abs(x1)))
            outs.append(jnp.exp(-gamma * sp0) + jnp.exp(-gamma * sp1))
        return outs

    if tr >= _CHUNK:
        n_chunks = tr // _CHUNK
        tail = tr - n_chunks * _CHUNK            # static; single-tile mode only
        assert not (needs_mask and tail), "masked configs are 32-row aligned"

        def chunk_body(c, accs):
            r0 = pl.multiple_of(c * _CHUNK, _CHUNK)
            x0c, x1c, tc = load(r0, _CHUNK)
            if needs_mask:
                m = chunk_iota < (valid_rows - r0)
                x0c = jnp.where(m, x0c, 0.0)
                x1c = jnp.where(m, x1c, 0.0)
                tc = jnp.where(m, tc, 0.0)
            new = list(accs)
            for s in range(0, _CHUNK, 8):        # 4x (8,128) vreg sub-slabs
                parts = pixel_stats(x0c[s:s + 8], x1c[s:s + 8], tc[s:s + 8])
                new = [a + p for a, p in zip(new, parts)]
            return tuple(new)

        init = tuple(jnp.zeros((8, _LANES), jnp.float32)
                     for _ in range(n_stats))
        accs = lax.fori_loop(0, n_chunks, chunk_body, init)
        reds = [jnp.sum(a, axis=0, keepdims=True) for a in accs]   # (1,128)
        if tail:
            parts = pixel_stats(*load(n_chunks * _CHUNK, tail))
            reds = [r + jnp.sum(p, axis=0, keepdims=True)
                    for r, p in zip(reds, parts)]
    else:
        # Tiny single-tile case (rows < 32): one shot, no loop.
        parts = pixel_stats(*load(0, tr))
        reds = [jnp.sum(p, axis=0, keepdims=True) for p in parts]

    if n_stats < _N_STATS:
        reds.append(jnp.zeros((_N_STATS - n_stats, _LANES), jnp.float32))
    out_ref[0] = out_ref[0] + jnp.concatenate(reds, axis=0)


# ----------------------------- helpers ---------------------------------------
@functools.lru_cache(maxsize=None)
def _num_tensorcores():
    """Best-effort TensorCores-per-chip (gates the megacore spatial split)."""
    try:
        info = pltpu.get_tpu_info()
    except Exception:
        return 1
    for name in ("num_cores", "core_count", "num_tensorcores",
                 "tensorcores_per_chip", "cores_per_chip"):
        v = getattr(info, name, None)
        if isinstance(v, int) and 0 < v <= 16:
            return v
    return 1


def _choose_tiling(rows, max_tile_rows, ncores):
    """Static (tile_rows, n_tiles): minimise padding, prefer tile counts
    divisible by the core count, prefer bigger tiles."""
    if rows <= max(max_tile_rows, _CHUNK):
        return rows, 1
    hi = max(_CHUNK, (max_tile_rows // _CHUNK) * _CHUNK)
    lo = max(_CHUNK, hi // 2)
    best = None
    for cand in range(hi, lo - 1, -_CHUNK):
        n_tiles = -(-rows // cand)
        pad_rows = n_tiles * cand - rows
        key = (pad_rows, (n_tiles % ncores) if ncores > 1 else 0, -cand)
        if best is None or key < best[0]:
            best = (key, cand, n_tiles)
    return best[1], best[2]


# -------------------------- pallas_call wrapper ------------------------------
def _per_sample_stats(inputs, targets, *, gamma,
                      max_tile_rows=_DEFAULT_TILE_ROWS):
    """Per-sample sums needed by HybridLoss.

    inputs : (N, 2, H, W) logits (any float dtype)
    targets: (N, H, W) hard {0,1} labels (any int/bool/float dtype)
    Returns (stats[N, 8] f32, pad_px) where pad_px pixels behaved like
    (x0, x1, t) == (0, 0, 0).
    """
    n, c, h, w = inputs.shape
    assert c == 2, "HybridLoss kernel expects 2-channel logits"
    hw = h * w
    lanes = _LANES
    rows = -(-hw // lanes)

    ncores = _num_tensorcores()
    tr, n_tiles = _choose_tiling(rows, max_tile_rows, ncores)

    # Megacore (v7x): shard each sample's spatial tiles across the parallel
    # grid axis.  No-op on single-TensorCore chips (v5e / v6e).
    split = ncores if (ncores > 1 and n_tiles >= ncores
                       and n_tiles % ncores == 0) else 1
    inner = n_tiles // split
    needs_mask = (n_tiles * tr != rows)

    # Lane-dense repack in native dtype.  No pad copy unless H*W % 128 != 0;
    # tile-granularity tails are masked in-kernel.
    x = inputs.reshape(n, 2, hw)
    t = targets.reshape(n, hw)
    lane_pad = rows * lanes - hw
    if lane_pad:
        # TODO(synk): the lane remainder still costs one pad copy; an
        # element-granular in-kernel mask would remove it too.
        x = jnp.pad(x, ((0, 0), (0, 0), (0, lane_pad)))
        t = jnp.pad(t, ((0, 0), (0, lane_pad)))
    x = x.reshape(n, 2, rows, lanes)
    t = t.reshape(n, rows, lanes)

    kernel = functools.partial(
        _hybrid_stats_kernel, gamma=float(gamma), tr=tr, rows_valid=rows,
        inner=inner, split=split, needs_mask=needs_mask)

    if split > 1:
        x_map = lambda i, j: (i // split, 0, (i % split) * inner + j, 0)
        t_map = lambda i, j: (i // split, (i % split) * inner + j, 0)
    else:
        x_map = lambda i, j: (i, 0, j, 0)
        t_map = lambda i, j: (i, j, 0)

    out = pl.pallas_call(
        kernel,
        out_shape=jax.ShapeDtypeStruct((n * split, _N_STATS, lanes),
                                       jnp.float32),
        grid_spec=pltpu.PrefetchScalarGridSpec(
            num_scalar_prefetch=0,
            grid=(n * split, inner),
            in_specs=[
                pl.BlockSpec((1, 2, tr, lanes), x_map),
                pl.BlockSpec((1, tr, lanes), t_map),
            ],
            out_specs=pl.BlockSpec((1, _N_STATS, lanes),
                                   lambda i, j: (i, 0, 0)),
        ),
        compiler_params=pltpu.CompilerParams(
            dimension_semantics=("parallel", "arbitrary")),
    )(x, t)

    stats = out.reshape(n, split, _N_STATS, lanes).sum(axis=(1, 3))   # (N, 8)
    pad_px = n_tiles * tr * lanes - hw
    return stats, pad_px


# ------------------------------ loss wrapper ---------------------------------
def hybrid_loss(inputs, targets, *, gamma=0.0, alpha=0.5, beta=0.5,
                tversky_alpha=0.3, tversky_beta=0.7,
                max_tile_rows=_DEFAULT_TILE_ROWS):
    """inputs: (N, 2, H, W) logits; targets: (N, H, W) hard {0,1} labels."""
    n, c, h, w = inputs.shape
    hw = h * w
    gamma = float(gamma)

    stats, pad_px = _per_sample_stats(inputs, targets, gamma=gamma,
                                      max_tile_rows=max_tile_rows)

    s_lse, s_x0, s_x1, s_t = stats[:, 0], stats[:, 1], stats[:, 2], stats[:, 3]
    s_x0t, s_x1t = stats[:, 4], stats[:, 5]

    # Padded/masked pixels behave exactly like (x0, x1, t) == (0, 0, 0): they
    # add log(2) each to the lse sum (and 2*0.5**gamma to the focal-weight
    # sum) and nothing anywhere else.
    ce_sum = (s_lse - pad_px * math.log(2.0)) - (s_x0 - s_x0t + s_x1t)

    tp1 = s_x0 - s_x0t               # sum x0 * (1 - t)
    tp2 = s_x1t                      # sum x1 * t
    sum_m1, sum_m11, sum_m22 = s_x0, s_x1, s_t
    sum_m2 = hw - s_t                # t in {0,1} -> |1 - t| == 1 - t

    # FocalLoss: scalar CE (mean over N*H*W) scaled by mean focal weight.
    ce_loss = jnp.sum(ce_sum) / (n * hw)
    if gamma != 0.0:
        fw_sum = stats[:, 6] - pad_px * 2.0 * (0.5 ** gamma)
        focal = ce_loss * jnp.sum(fw_sum) / (n * c * hw)
    else:
        focal = ce_loss                 # (1 - sigmoid(x))**0 == 1 everywhere

    # dice_loss (per sample, averaged)
    dice_i = (1.0 - (2.0 * tp1 + 1.0) / (sum_m1 + sum_m2 + 1.0)) + \
             (1.0 - (2.0 * tp2 + 1.0) / (sum_m11 + sum_m22 + 1.0))
    dice = jnp.sum(dice_i) / n

    # TverskyLoss
    fp1, fn1 = s_x0t, sum_m2 - tp1
    fp2, fn2 = sum_m11 - tp2, sum_m22 - tp2
    ti1 = (tp1 + 1.0) / (tp1 + tversky_alpha * fp1 + tversky_beta * fn1 + 1.0)
    ti2 = (tp2 + 1.0) / (tp2 + tversky_alpha * fp2 + tversky_beta * fn2 + 1.0)
    tversky = jnp.sum((1.0 - ti1) + (1.0 - ti2)) / n

    g = 1.0 - alpha - beta
    return alpha * focal + beta * dice + g * tversky


# --------------------------- pure-JAX reference -------------------------------
def _reference(inputs, targets, *, gamma=0.0, alpha=0.5, beta=0.5,
               tversky_alpha=0.3, tversky_beta=0.7):
    n, c, h, w = inputs.shape
    t = targets.astype(jnp.float32)
    logp = jax.nn.log_softmax(inputs, axis=1)
    tgt_logp = jnp.where(t > 0.5, logp[:, 1], logp[:, 0])
    ce = -jnp.mean(tgt_logp)
    pt = jax.nn.sigmoid(inputs)
    focal = jnp.mean((1.0 - pt) ** gamma * ce)

    m1 = inputs[:, 0].reshape(n, -1)
    m11 = inputs[:, 1].reshape(n, -1)
    m22 = t.reshape(n, -1)
    m2 = jnp.abs(1.0 - m22)
    tp1 = jnp.sum(m1 * m2, -1); tp2 = jnp.sum(m11 * m22, -1)
    dice = jnp.mean((1 - (2 * tp1 + 1) / (m1.sum(-1) + m2.sum(-1) + 1)) +
                    (1 - (2 * tp2 + 1) / (m11.sum(-1) + m22.sum(-1) + 1)))
    fp1 = jnp.sum((1 - m2) * m1, -1); fn1 = jnp.sum(m2 * (1 - m1), -1)
    fp2 = jnp.sum((1 - m22) * m11, -1); fn2 = jnp.sum(m22 * (1 - m11), -1)
    ti1 = (tp1 + 1) / (tp1 + tversky_alpha * fp1 + tversky_beta * fn1 + 1)
    ti2 = (tp2 + 1) / (tp2 + tversky_alpha * fp2 + tversky_beta * fn2 + 1)
    tversky = jnp.mean((1 - ti1) + (1 - ti2))
    return alpha * focal + beta * dice + (1 - alpha - beta) * tversky


if __name__ == "__main__":
    key = jax.random.PRNGKey(0)

    # (N, H, W, gamma, alpha, beta, max_tile_rows, logits_dtype)
    cases = [
        (2, 16, 16, 0.0, 0.5, 0.5, _DEFAULT_TILE_ROWS, jnp.float32),  # default
        (2, 16, 16, 2.0, 0.5, 0.5, _DEFAULT_TILE_ROWS, jnp.float32),  # focal wt
        (2, 10, 10, 0.0, 0.4, 0.4, _DEFAULT_TILE_ROWS, jnp.float32),  # lane pad
        (1, 128, 128, 0.0, 0.5, 0.5, 96, jnp.bfloat16),   # multi-tile, bf16
        (2, 80, 80, 2.0, 0.5, 0.5, 40, jnp.float32),      # masked tail tile
        (1, 80, 80, 0.0, 0.5, 0.5, _DEFAULT_TILE_ROWS, jnp.float32),  # 32-row
                                                          # chunk + static tail
    ]
    for idx, (n, h, w, gamma, alpha, beta, mtr, xdt) in enumerate(cases):
        k1, k2 = jax.random.split(jax.random.fold_in(key, idx))
        x = jax.random.normal(k1, (n, 2, h, w), dtype=jnp.float32).astype(xdt)
        y = (jax.random.uniform(k2, (n, h, w)) > 0.5).astype(jnp.int8)

        got = jax.block_until_ready(
            hybrid_loss(x, y, gamma=gamma, alpha=alpha, beta=beta,
                        max_tile_rows=mtr))
        want = jax.block_until_ready(
            _reference(x.astype(jnp.float32), y,
                       gamma=gamma, alpha=alpha, beta=beta))
        tol = 1e-3 if xdt == jnp.bfloat16 else 2e-4
        assert jnp.allclose(got, want, atol=tol, rtol=tol), \
            (idx, float(got), float(want))

    print("KERNEL_OK")
</pallas_src>

<mosaic_0001>
module attributes {stable_mosaic.version = 11 : i64} {
  func.func @_hybrid_stats_kernel(%arg0: i32, %arg1: i32, %arg2: memref<1x2x2x128xf32, #tpu.memory_space<vmem>>, %arg3: memref<1x2x128xi8, #tpu.memory_space<vmem>>, %arg4: memref<1x8x128xf32, #tpu.memory_space<vmem>>) attributes {dimension_semantics = [#tpu.dimension_semantics<parallel>, #tpu.dimension_semantics<arbitrary>], iteration_bounds = array<i64: 2, 1>, scalar_prefetch = 0 : i64, scratch_operands = 0 : i64, tpu.core_type = #tpu.core_type<tc>, window_params = [{transform_indices = @transform_0, window_bounds = array<i64: 1, 2, 2, 128>}, {transform_indices = @transform_1, window_bounds = array<i64: 1, 2, 128>}, {transform_indices = @transform_2, window_bounds = array<i64: 1, 8, 128>}]} {
    %c0_i32 = arith.constant 0 : i32
    %0 = arith.cmpi eq, %arg1, %c0_i32 : i32
    %1 = arith.extui %0 : i1 to i32
    %c0_i32_0 = arith.constant 0 : i32
    %2 = arith.cmpi ne, %1, %c0_i32_0 : i32
    scf.if %2 {
      %cst_23 = arith.constant 0.000000e+00 : f32
      %40 = vector.broadcast %cst_23 : f32 to vector<1x8x128xf32>
      %c0_24 = arith.constant 0 : index
      %c0_25 = arith.constant 0 : index
      %c0_26 = arith.constant 0 : index
      %41 = vector.load %arg4[%c0_24, %c0_25, %c0_26] : memref<1x8x128xf32, #tpu.memory_space<vmem>>, vector<1x8x128xf32>
      tpu.vector_store %arg4[%c0_24, %c0_25, %c0_26], %40 {strides = array<i32>} : memref<1x8x128xf32, #tpu.memory_space<vmem>>, vector<1x8x128xf32>,
    } else {
    }
    %c0 = arith.constant 0 : index
    %c0_1 = arith.constant 0 : index
    %c0_2 = arith.constant 0 : index
    %c0_3 = arith.constant 0 : index
    %3 = vector.load %arg2[%c0, %c0_1, %c0_2, %c0_3] : memref<1x2x2x128xf32, #tpu.memory_space<vmem>>, vector<1x1x2x128xf32>
    %4 = vector.shape_cast %3 : vector<1x1x2x128xf32> to vector<2x128xf32>
    %c0_4 = arith.constant 0 : index
    %c1 = arith.constant 1 : index
    %c0_5 = arith.constant 0 : index
    %c0_6 = arith.constant 0 : index
    %5 = vector.load %arg2[%c0_4, %c1, %c0_5, %c0_6] : memref<1x2x2x128xf32, #tpu.memory_space<vmem>>, vector<1x1x2x128xf32>
    %6 = vector.shape_cast %5 : vector<1x1x2x128xf32> to vector<2x128xf32>
    %c0_7 = arith.constant 0 : index
    %c0_8 = arith.constant 0 : index
    %c0_9 = arith.constant 0 : index
    %7 = vector.load %arg3[%c0_7, %c0_8, %c0_9] : memref<1x2x128xi8, #tpu.memory_space<vmem>>, vector<1x2x128xi8>
    %8 = vector.shape_cast %7 : vector<1x2x128xi8> to vector<2x128xi8>
    %9 = arith.sitofp %8 : vector<2x128xi8> to vector<2x128xf32>
    %10 = arith.maximumf %4, %6 : vector<2x128xf32>
    %11 = arith.subf %4, %6 : vector<2x128xf32>
    %12 = math.absf %11 : vector<2x128xf32>
    %cst = arith.constant 0.000000e+00 : f32
    %13 = vector.broadcast %cst : f32 to vector<2x128xf32>
    %14 = arith.subf %13, %12 : vector<2x128xf32>
    %15 = math.exp %14 : vector<2x128xf32>
    %16 = math.log1p %15 : vector<2x128xf32>
    %17 = arith.addf %10, %16 : vector<2x128xf32>
    %18 = arith.mulf %4, %9 : vector<2x128xf32>
    %19 = arith.mulf %6, %9 : vector<2x128xf32>
    %cst_10 = arith.constant dense<0.000000e+00> : vector<128xf32>
    %20 = vector.multi_reduction <add>, %17, %cst_10 [0] : vector<2x128xf32> to vector<128xf32>
    %21 = vector.shape_cast %20 : vector<128xf32> to vector<1x128xf32>
    %cst_11 = arith.constant dense<0.000000e+00> : vector<128xf32>
    %22 = vector.multi_reduction <add>, %4, %cst_11 [0] : vector<2x128xf32> to vector<128xf32>
    %23 = vector.shape_cast %22 : vector<128xf32> to vector<1x128xf32>
    %cst_12 = arith.constant dense<0.000000e+00> : vector<128xf32>
    %24 = vector.multi_reduction <add>, %6, %cst_12 [0] : vector<2x128xf32> to vector<128xf32>
    %25 = vector.shape_cast %24 : vector<128xf32> to vector<1x128xf32>
    %cst_13 = arith.constant dense<0.000000e+00> : vector<128xf32>
    %26 = vector.multi_reduction <add>, %9, %cst_13 [0] : vector<2x128xf32> to vector<128xf32>
    %27 = vector.shape_cast %26 : vector<128xf32> to vector<1x128xf32>
    %cst_14 = arith.constant dense<0.000000e+00> : vector<128xf32>
    %28 = vector.multi_reduction <add>, %18, %cst_14 [0] : vector<2x128xf32> to vector<128xf32>
    %29 = vector.shape_cast %28 : vector<128xf32> to vector<1x128xf32>
    %cst_15 = arith.constant dense<0.000000e+00> : vector<128xf32>
    %30 = vector.multi_reduction <add>, %19, %cst_15 [0] : vector<2x128xf32> to vector<128xf32>
    %31 = vector.shape_cast %30 : vector<128xf32> to vector<1x128xf32>
    %cst_16 = arith.constant 0.000000e+00 : f32
    %32 = vector.broadcast %cst_16 : f32 to vector<2x128xf32>
    %c0_17 = arith.constant 0 : index
    %c0_18 = arith.constant 0 : index
    %c0_19 = arith.constant 0 : index
    %33 = vector.load %arg4[%c0_17, %c0_18, %c0_19] : memref<1x8x128xf32, #tpu.memory_space<vmem>>, vector<1x8x128xf32>
    %34 = vector.shape_cast %33 : vector<1x8x128xf32> to vector<8x128xf32>
    %35 = tpu.concatenate %21, %23, %25, %27, %29, %31, %32 in 0 : vector<1x128xf32>, vector<1x128xf32>, vector<1x128xf32>, vector<1x128xf32>, vector<1x128xf32>, vector<1x128xf32>, vector<2x128xf32> -> vector<8x128xf32>
    %36 = arith.addf %34, %35 : vector<8x128xf32>
    %c0_20 = arith.constant 0 : index
    %c0_21 = arith.constant 0 : index
    %c0_22 = arith.constant 0 : index
    %37 = vector.load %arg4[%c0_20, %c0_21, %c0_22] : memref<1x8x128xf32, #tpu.memory_space<vmem>>, vector<1x8x128xf32>
    %38 = vector.shape_cast %37 : vector<1x8x128xf32> to vector<8x128xf32>
    %39 = vector.shape_cast %36 : vector<8x128xf32> to vector<1x8x128xf32>
    tpu.vector_store %arg4[%c0_20, %c0_21, %c0_22], %39 {strides = array<i32>} : memref<1x8x128xf32, #tpu.memory_space<vmem>>, vector<1x8x128xf32>,
    return
  }
  func.func @transform_0(%arg0: i32, %arg1: i32) -> (i32, i32, i32, i32) {
    %c0_i32 = arith.constant 0 : i32
    %c0_i32_0 = arith.constant 0 : i32
    %c0_i32_1 = arith.constant 0 : i32
    return %arg0, %c0_i32, %arg1, %c0_i32_0 : i32, i32, i32, i32
  }
  func.func @transform_1(%arg0: i32, %arg1: i32) -> (i32, i32, i32) {
    %c0_i32 = arith.constant 0 : i32
    %c0_i32_0 = arith.constant 0 : i32
    return %arg0, %arg1, %c0_i32 : i32, i32, i32
  }
  func.func @transform_2(%arg0: i32, %arg1: i32) -> (i32, i32, i32) {
    %c0_i32 = arith.constant 0 : i32
    %c0_i32_0 = arith.constant 0 : i32
    %c0_i32_1 = arith.constant 0 : i32
    return %arg0, %c0_i32, %c0_i32_0 : i32, i32, i32
  }
}

</mosaic_0001>

<llo_original>
// kernel: tpu_custom_call.1
$region0: #{tpu_custom_call.1}
  #allocation0 [shape = 'u32[]', space=smem, size = 0x4, offset = 0x4, fixed_abs, tag = 'smem constant byte address 0x4 - core index']
  #allocation1 [shape = 'u32[144,128]{1,0:T(1,128)}', space=vmem, size = 0x12000, scoped, tag = 'internal scratch']
  %s0 = inlined_call_operand.hbm [shape: f32[2,2,2,128], index: 0, kind: input, shape index: {}]
  %s1 = inlined_call_operand.vmem [shape: s8[2,2,128], index: 1, kind: input, shape index: {}]
  %s2 = inlined_call_operand.hbm [shape: f32[2,8,128], index: 2, kind: output, shape index: {}]
  %s3 = sld [smem:[#allocation0]]
  $region49: #{tpu_custom_call.1} parent=0
    _
  %s5 = ssub.s32 1, %s3
  %s6 = scalar_select 0, %s5, %s3
  $region1: #{tpu_custom_call.1} parent=0
    #allocation2 [shape = 'u8[4096]{0}', space=vmem, size = 0x1000, scoped, tag = 'input window, operand 0']
    #allocation3 [shape = 's32[2]{0}', space=sflag, size = 0x8, scoped, tag = 'scoped memory for tpu_custom_call.1']
    #allocation4 [shape = 's32[2]{0}', space=sflag, size = 0x8, scoped, tag = 'scoped memory for tpu_custom_call.1']
    #allocation5 [shape = 'u8[8192]{0}', space=vmem, size = 0x2000, scoped, tag = 'output window, operand 0']
    %7 = vsyncpa [#allocation3], 0
    %s8 = scalar_lea.sflag [#allocation3], 1
    %9 = vsyncpa %s8, 0
    %10 = vsyncpa [#allocation4], 0
    %s11 = scalar_lea.sflag [#allocation4], 1
    %12 = vsyncpa %s11, 0
    loop: start=0, step=1, limit=4
    $region2: #{tpu_custom_call.1} parent=1 // loop_pre_header
      _
    $region3: #{tpu_custom_call.1} parent=1 // loop_header
      %s14 = sphi 0, %s18
      %p15 = scmp.ge.s32.totalorder %s14, 4
      %s21 = sphi 0, %s33
      %s22 = sphi 0, %s29
      %s23 = sphi 0, %s21
      %s24 = sphi 0, %s22
      %s25 = sphi 0, %s23
      %s26 = sphi 0, %s24
      %s38 = sphi 0, %s40
      %s41 = sphi 0, %s38
      %s42 = sphi 0, %s41
      %s58 = sphi 0, %s42
      %s66 = sphi 0, %s68
      %s69 = sphi 0, %s66
      %s70 = sphi 0, %s69
      %s86 = sphi 0, %s70
      %s92 = sphi 0, %s94
      %s95 = sphi 0, %s92
      %s96 = sphi 0, %s95
      %s112 = sphi 0, %s96
    $region4: #{tpu_custom_call.1} parent=1 // loop_header_branch
      %17 = sbr.rel (%p15) target = $region8
    $region5: #{tpu_custom_call.1} parent=1 // loop_body
      %s19 = ssub.s32 %s14, 1
      %s20 = ssub.s32 %s14, 2
      %s27 = sadd.s32 1, %s22
      %p28 = scmp.ge.s32.totalorder %s27, 1
      %s29 = scalar_select %p28, 0, %s27
      %s30 = sadd.s32 1, %s21
      %s31 = scalar_select %p28, %s30, %s21
      %p32 = scmp.ge.s32.totalorder %s31, 2
      %s33 = scalar_select %p32, 0, %s31
      %s34 = ssub.s32 %s21, %s33
      %s35 = ssub.s32 %s22, %s29
      %s36 = sor.u32 %s34, %s35
      %p37 = scmp.eq.s32.totalorder %s36, 0
      %s39 = sadd.s32 %s38, 1
      %s40 = scalar_select %p37, %s38, %s39
      %p43 = pneg %p37
      %p44 = scmp.eq.s32.totalorder %s14, 1
      %p45 = por %p43, %p44
      %p46 = scmp.ne.s32.totalorder %s38, %s41
      %p47 = scmp.eq.s32.totalorder %s14, 0
      %p48 = por %p46, %p47
      %p49 = scmp.ne.s32.totalorder %s38, %s41
      %p50 = scmp.eq.s32.totalorder %s19, 1
      %p51 = por %p49, %p50
      %p52 = scmp.ne.s32.totalorder %s41, %s42
      %p53 = scmp.eq.s32.totalorder %s19, 0
      %p54 = por %p52, %p53
      %p55 = scmp.ne.s32.totalorder %s41, %s42
      %p56 = scmp.eq.s32.totalorder %s20, 1
      %p57 = por %p55, %p56
      %p59 = scmp.ne.s32.totalorder %s42, %s58
      %p60 = scmp.eq.s32.totalorder %s20, 0
      %p61 = por %p59, %p60
      %s62 = ssub.s32 %s21, %s33
      %s63 = ssub.s32 %s22, %s29
      %s64 = sor.u32 %s62, %s63
      %p65 = scmp.eq.s32.totalorder %s64, 0
      %s67 = sadd.s32 %s66, 1
      %s68 = scalar_select %p65, %s66, %s67
      %p71 = pneg %p65
      %p72 = scmp.eq.s32.totalorder %s14, 1
      %p73 = por %p71, %p72
      %p74 = scmp.ne.s32.totalorder %s66, %s69
      %p75 = scmp.eq.s32.totalorder %s14, 0
      %p76 = por %p74, %p75
      %p77 = scmp.ne.s32.totalorder %s66, %s69
      %p78 = scmp.eq.s32.totalorder %s19, 1
      %p79 = por %p77, %p78
      %p80 = scmp.ne.s32.totalorder %s69, %s70
      %p81 = scmp.eq.s32.totalorder %s19, 0
      %p82 = por %p80, %p81
      %p83 = scmp.ne.s32.totalorder %s69, %s70
      %p84 = scmp.eq.s32.totalorder %s20, 1
      %p85 = por %p83, %p84
      %p87 = scmp.ne.s32.totalorder %s70, %s86
      %p88 = scmp.eq.s32.totalorder %s20, 0
      %p89 = por %p87, %p88
      %s90 = ssub.s32 %s21, %s33
      %p91 = scmp.eq.s32.totalorder %s90, 0
      %s93 = sadd.s32 %s92, 1
      %s94 = scalar_select %p91, %s92, %s93
      %p97 = pneg %p91
      %p98 = scmp.eq.s32.totalorder %s14, 1
      %p99 = por %p97, %p98
      %p100 = scmp.ne.s32.totalorder %s92, %s95
      %p101 = scmp.eq.s32.totalorder %s14, 0
      %p102 = por %p100, %p101
      %p103 = scmp.ne.s32.totalorder %s92, %s95
      %p104 = scmp.eq.s32.totalorder %s19, 1
      %p105 = por %p103, %p104
      %p106 = scmp.ne.s32.totalorder %s95, %s96
      %p107 = scmp.eq.s32.totalorder %s19, 0
      %p108 = por %p106, %p107
      %p109 = scmp.ne.s32.totalorder %s95, %s96
      %p110 = scmp.eq.s32.totalorder %s20, 1
      %p111 = por %p109, %p110
      %p113 = scmp.ne.s32.totalorder %s96, %s112
      %p114 = scmp.eq.s32.totalorder %s20, 0
      %p115 = por %p113, %p114
      %p116 = scmp.le.s32.totalorder 1, %s14
      %p117 = scmp.lt.s32.totalorder %s14, 3
      %p118 = pnand %p116, %p117
      %p119 = pneg %p118
      // Predicated region
      $region9: #{tpu_custom_call.1} parent=5 // pred_check
        _
      $region10: #{tpu_custom_call.1} parent=5 // pred_check_branch
        %121 = sbr.rel (%p118) target = $region12
      $region11: #{tpu_custom_call.1} parent=5 // pred_region
        %s122 = ssub.s32 %s14, 1
      $region12: #{tpu_custom_call.1} parent=5 // pred_fallthru
        _
      %p123 = scmp.lt.s32.totalorder %s14, 2
      // Predicated region
      $region13: #{tpu_custom_call.1} parent=5 // pred_check
        %p124 = pneg %p123
      $region14: #{tpu_custom_call.1} parent=5 // pred_check_branch
        %126 = sbr.rel (%p124) target = $region16
      $region15: #{tpu_custom_call.1} parent=5 // pred_region
        // Predicated region
        $region17: #{tpu_custom_call.1} parent=15 // pred_check
          %p127 = pneg %p48
        $region18: #{tpu_custom_call.1} parent=15 // pred_check_branch
          %129 = sbr.rel (%p127) target = $region20
        $region19: #{tpu_custom_call.1} parent=15 // pred_region
          %s130 = sand.u32 %s38, 1
          %s131 = scalar_lea.sflag [#allocation3], %s130
          %s132 = sand.u32 %s38, 1
          %s133 = smul.addr %s132, 4
          %s134 = scalar_lea.vmem [#allocation2], %s133
          %s136 = ssub.s32 64, 64
          %137 = vsyncadd %s131, %s136
          %s138 = smul.addr %s21, 2
          %s139 = sadd.s32 %s22, %s138
          %s140 = smul.addr %s139, 32
          %s141 = scalar_lea.hbm %s0, %s140
          %s142 = sshll.u32 %s134, 4
          %s143 = int_to_ptr.vmem [resolvable:$true] %s142
          %148 = dma.hbm_to_vmem [thread:$0]  %s141, 64, %s143, %s131, 32, 32, 2
        $region20: #{tpu_custom_call.1} parent=15 // pred_fallthru
          _
        // Predicated region
        $region21: #{tpu_custom_call.1} parent=15 // pred_check
          %p149 = pneg %p76
        $region22: #{tpu_custom_call.1} parent=15 // pred_check_branch
          %151 = sbr.rel (%p149) target = $region24
        $region23: #{tpu_custom_call.1} parent=15 // pred_region
          %p152 = scmp.lt.s32.totalorder %s21, 1
          %s153 = scalar_select %p152, %s21, 1
          %p154 = scmp.lt.s32.totalorder %s22, 0
          %s155 = scalar_select %p154, %s22, 0
          %s156 = sadd.s32 %s155, %s153
          %s157 = scalar_lea.vmem %s1, %s156
        $region24: #{tpu_custom_call.1} parent=15 // pred_fallthru
          _
      $region16: #{tpu_custom_call.1} parent=5 // pred_fallthru
        _
      %p158 = scmp.le.s32.totalorder 1, %s14
      %p159 = scmp.lt.s32.totalorder %s14, 3
      %p160 = pnand %p158, %p159
      %p161 = pneg %p160
      // Predicated region
      $region25: #{tpu_custom_call.1} parent=5 // pred_check
        _
      $region26: #{tpu_custom_call.1} parent=5 // pred_check_branch
        %163 = sbr.rel (%p160) target = $region28
      $region27: #{tpu_custom_call.1} parent=5 // pred_region
        %s164 = ssub.s32 %s14, 1
        %s165 = sand.u32 %s41, 1
        %s166 = scalar_lea.sflag [#allocation3], %s165
        %s167 = sand.u32 %s41, 1
        %s168 = smul.addr %s167, 4
        %s169 = scalar_lea.vmem [#allocation2], %s168
        // Predicated region
        $region29: #{tpu_custom_call.1} parent=27 // pred_check
          %p170 = pneg %p54
        $region30: #{tpu_custom_call.1} parent=27 // pred_check_branch
          %172 = sbr.rel (%p170) target = $region32
        $region31: #{tpu_custom_call.1} parent=27 // pred_region
          %173 = dma.done %s166, 64
        $region32: #{tpu_custom_call.1} parent=27 // pred_fallthru
          _
        %s174 = sand.u32 %s41, 1
        %s175 = scalar_lea.sflag [#allocation3], %s174
        %s176 = sand.u32 %s41, 1
        %s177 = smul.addr %s176, 4
        %s178 = scalar_lea.vmem [#allocation2], %s177
        %p179 = pneg %p54
        %p180 = pneg %p51
        %p181 = scmp.lt.s32.totalorder %s23, 1
        %s182 = scalar_select %p181, %s23, 1
        %p183 = scmp.lt.s32.totalorder %s24, 0
        %s184 = scalar_select %p183, %s24, 0
        %s185 = sadd.s32 %s184, %s182
        %s186 = scalar_lea.vmem %s1, %s185
        %p187 = pneg %p82
        %p188 = pneg %p79
        %p189 = pneg %p108
        %p190 = pneg %p105
        %s191 = sand.u32 %s95, 1
        %s192 = scalar_lea.sflag [#allocation4], %s191
        %s193 = sand.u32 %s95, 1
        %s194 = smul.addr %s193, 8
        %s195 = scalar_lea.vmem [#allocation5], %s194
        %p196 = scmp.lt.s32.totalorder %s23, 1
        %s197 = scalar_select %p196, %s23, 1
        %p198 = scmp.lt.s32.totalorder %s24, 0
        %s199 = scalar_select %p198, %s24, 0
        %s200 = sadd.s32 %s199, %s197
        %s201 = scalar_lea.vmem %s1, %s200
        %p202 = scmp.eq.s32.totalorder %s24, 0
        // Predicated region
        $region33: #{tpu_custom_call.1} parent=27 // pred_check
          %p203 = pneg %p202
        $region34: #{tpu_custom_call.1} parent=27 // pred_check_branch
          %205 = sbr.rel (%p203) target = $region36
        $region35: #{tpu_custom_call.1} parent=27 // pred_region
          %206 = vst [vmem:[%s195] sm:$0xff] 0.0
        $region36: #{tpu_custom_call.1} parent=27 // pred_fallthru
          _
        %v207 = vld [vmem:[%s169] sm:$0x3]
        %s208 = scalar_lea.vmem %s169, 2 [#allocation2]
        %v209 = vld [vmem:[%s208] sm:$0x3]
        %v210 = vld [vmem:[%s201] sm:$0x1]
        %v211 = vunpack.c.0.s8 %v210
        %v212 = vcvt.s32.f32 %v211
        %v213 = vmax.f32 %v207, %v209
        %v214 = vsub.f32 %v207, %v209
        %v215 = vand.u32 2147483647, %v214
        %v216 = vsub.f32 0.0, %v215
        %v217 = vmul.f32 %v216, 1.442695
        %v218 = vpow.pop %v217
        %v219 = vadd.f32 %v218, 1.0
        %v220 = vlog2.pop %v219
        %v221 = vmul.f32 %v220, 0.6931472
        %v222 = vmul.f32 -0.5, %v218
        %v223 = vadd.f32 %v222, 1.0
        %v224 = vmul.f32 %v223, %v218
        %v225 = vand.u32 2147483647, %v218
        %vm226 = vcmp.lt.f32.partialorder %v225, 0.0004427343
        %v227 = vsel %vm226, %v224, %v221
        %v228 = vadd.f32 %v213, %v227
        %v229 = vmul.f32 %v207, %v212
        %v230 = vmul.f32 %v209, %v212
        %vm231 = vcmask 1041408
        %v232 = vsel %vm231, %v228, 0.0
        %v233 = vrot.slane %v232, 4
        %v234 = vadd.f32 %v232, %v233
        %v235 = vrot.slane %v234, 2
        %v236 = vadd.f32 %v234, %v235
        %v237 = vrot.slane %v236, 1
        %v238 = vadd.f32 %v236, %v237
        %v239 = vsel %vm231, %v207, 0.0
        %v240 = vrot.slane %v239, 4
        %v241 = vadd.f32 %v239, %v240
        %v242 = vrot.slane %v241, 2
        %v243 = vadd.f32 %v241, %v242
        %v244 = vrot.slane %v243, 1
        %v245 = vadd.f32 %v243, %v244
        %v246 = vsel %vm231, %v209, 0.0
        %v247 = vrot.slane %v246, 4
        %v248 = vadd.f32 %v246, %v247
        %v249 = vrot.slane %v248, 2
        %v250 = vadd.f32 %v248, %v249
        %v251 = vrot.slane %v250, 1
        %v252 = vadd.f32 %v250, %v251
        %v253 = vsel %vm231, %v212, 0.0
        %v254 = vrot.slane %v253, 4
        %v255 = vadd.f32 %v253, %v254
        %v256 = vrot.slane %v255, 2
        %v257 = vadd.f32 %v255, %v256
        %v258 = vrot.slane %v257, 1
        %v259 = vadd.f32 %v257, %v258
        %v260 = vsel %vm231, %v229, 0.0
        %v261 = vrot.slane %v260, 4
        %v262 = vadd.f32 %v260, %v261
        %v263 = vrot.slane %v262, 2
        %v264 = vadd.f32 %v262, %v263
        %v265 = vrot.slane %v264, 1
        %v266 = vadd.f32 %v264, %v265
        %v267 = vsel %vm231, %v230, 0.0
        %v268 = vrot.slane %v267, 4
        %v269 = vadd.f32 %v267, %v268
        %v270 = vrot.slane %v269, 2
        %v271 = vadd.f32 %v269, %v270
        %v272 = vrot.slane %v271, 1
        %v273 = vadd.f32 %v271, %v272
        %v274 = vld [vmem:[%s195] sm:$0xff]
        %vm275 = vcmask 1040384
        %v276 = vsel %vm275, %v238, %v245
        %v277 = vsel %vm231, %v276, %v252
        %vm278 = vcmask 1042432
        %v279 = vsel %vm278, %v277, %v259
        %vm280 = vcmask 1043456
        %v281 = vsel %vm280, %v279, %v266
        %vm282 = vcmask 1044480
        %v283 = vsel %vm282, %v281, %v273
        %vm284 = vcmask 1045504
        %v285 = vsel %vm284, %v283, 0.0
        %v286 = vadd.f32 %v274, %v285
        %287 = vst [vmem:[%s195] sm:$0xff] %v286
        %s288 = sand.u32 %s95, 1
        %s289 = scalar_lea.sflag [#allocation4], %s288
        %s290 = sand.u32 %s95, 1
        %s291 = smul.addr %s290, 8
        %s292 = scalar_lea.vmem [#allocation5], %s291
        // Predicated region
        $region37: #{tpu_custom_call.1} parent=27 // pred_check
          %p293 = pneg %p105
        $region38: #{tpu_custom_call.1} parent=27 // pred_check_branch
          %295 = sbr.rel (%p293) target = $region40
        $region39: #{tpu_custom_call.1} parent=27 // pred_region
          %s297 = ssub.s32 128, 128
          %298 = vsyncadd %s289, %s297
          %s299 = smul.addr %s23, 128
          %s300 = scalar_lea.hbm %s2, %s299
          %s302 = sshll.u32 %s292, 4
          %s303 = int_to_ptr.vmem [resolvable:$true] %s302
          %305 = dma.vmem_to_hbm [thread:$0]  %s303, 128, %s300, %s289
        $region40: #{tpu_custom_call.1} parent=27 // pred_fallthru
          _
      $region28: #{tpu_custom_call.1} parent=5 // pred_fallthru
        _
      %p306 = scmp.le.s32.totalorder 2, %s14
      // Predicated region
      $region41: #{tpu_custom_call.1} parent=5 // pred_check
        %p307 = pneg %p306
      $region42: #{tpu_custom_call.1} parent=5 // pred_check_branch
        %309 = sbr.rel (%p307) target = $region44
      $region43: #{tpu_custom_call.1} parent=5 // pred_region
        %s310 = ssub.s32 %s14, 2
        // Predicated region
        $region45: #{tpu_custom_call.1} parent=43 // pred_check
          %p311 = pneg %p111
        $region46: #{tpu_custom_call.1} parent=43 // pred_check_branch
          %313 = sbr.rel (%p311) target = $region48
        $region47: #{tpu_custom_call.1} parent=43 // pred_region
          %s314 = sand.u32 %s96, 1
          %s315 = scalar_lea.sflag [#allocation4], %s314
          %s316 = sand.u32 %s96, 1
          %s317 = smul.addr %s316, 8
          %s318 = scalar_lea.vmem [#allocation5], %s317
          %319 = dma.done %s315, 128
        $region48: #{tpu_custom_call.1} parent=43 // pred_fallthru
          _
      $region44: #{tpu_custom_call.1} parent=5 // pred_fallthru
        _
    $region6: #{tpu_custom_call.1} parent=1 // loop_footer
      %s18 = sadd.s32 1, %s14
    $region7: #{tpu_custom_call.1} parent=1 // loop_footer_branch
      %13 = sbr.rel target = $region3
    $region8: #{tpu_custom_call.1} parent=1 // loop_exit
      _
    %320 = vsyncpa [#allocation3], 1
    %s321 = scalar_lea.sflag [#allocation3], 1
    %322 = vsyncpa %s321, 1
    %323 = vsyncpa [#allocation4], 1
    %s324 = scalar_lea.sflag [#allocation4], 1
    %325 = vsyncpa %s324, 1

</llo_original>
